<compile_context>
chip_gen: v7x
topology: tpu7x:2x2x1
jax: 0.10.0
libtpu: 0.0.40
codegen_flags: <defaults>
</compile_context>

<pallas_src>
import functools

import jax
import jax.numpy as jnp
from jax.experimental import pallas as pl
from jax.experimental.pallas import tpu as pltpu


# ----------------------------------------------------------------------------
# helpers
# ----------------------------------------------------------------------------
def _round_up(x, m):
    return ((x + m - 1) // m) * m


def _pick_batch_tiling(B, L, max_rows=2048):
    """Sublane-dense batch tiles (multiple of 8); >=2 grid steps when possible so
    both v7x TensorCores get a tile; rows-per-step capped so the f32 (rows, FP)
    conv activations stay far inside v7x's 64 MiB VMEM."""
    cap = max(8, (max_rows // max(L, 1)) // 8 * 8)
    b_pad = _round_up(max(B, 1), 16)                    # room for >= 2 tiles of 8
    b_tile = min(cap, max(8, _round_up(b_pad // 2, 8)))
    n_tiles = pl.cdiv(b_pad, b_tile)
    return b_tile, n_tiles


# ----------------------------------------------------------------------------
# kernel
# ----------------------------------------------------------------------------
def fused_convpool_kernel(emb_ref, wf_ref, bm_ref, wo_ref, bo_ref, out_ref, *,
                          w_max, seq_len):
    """One grid step == one batch tile.

    emb_ref : (rows, E)        rows = b_tile * seq_len, bf16 embedded tokens
    wf_ref  : (w_max*E, FP)    fused + zero-padded conv weight (bf16)
    bm_ref  : (rows, FP)       fused bias (valid positions) + -1e30 (invalid), f32
    wo_ref  : (FP, RP)         zero-padded output linear weight, f32
    bo_ref  : (1, RP)          zero-padded output bias, f32
    out_ref : (b_tile, RP)     f32, lane/sublane dense
    """
    rows, E = emb_ref.shape
    FP = wf_ref.shape[-1]
    bt = rows // seq_len

    # Keep the shift/concat relayouts in 32-bit (best-supported layout path);
    # the MXU still consumes bf16 via the cast right before the dot.
    x0 = emb_ref[...].astype(jnp.float32)                       # (rows, E)

    # im2col: x[:, k*E:(k+1)*E] holds the sequence shifted by k.  Rows whose
    # shift runs past a sequence end (or across a batch boundary in the flat
    # layout) only feed positions the validity mask sends to -1e30.
    cols = [x0]
    for k in range(1, w_max):                                    # static unroll
        # TODO(synk): pltpu.roll(x0, rows - k, axis=0) would do this shift on the
        # idle XLU instead of a slice+concat relayout copy.
        shifted = jnp.concatenate(
            [x0[k:, :], jnp.zeros((k, E), jnp.float32)], axis=0)
        cols.append(shifted)
    x = jnp.concatenate(cols, axis=-1).astype(wf_ref.dtype)      # (rows, w_max*E)

    # Single fused conv matmul for all filter widths.
    s = jnp.dot(x, wf_ref[...], preferred_element_type=jnp.float32)  # (rows, FP)
    s = s + bm_ref[...]                 # bias at valid positions, -1e30 elsewhere

    # Max over time (only valid positions survive), then ReLU (monotone, so this
    # equals PyTorch's ReLU-then-max-pool).
    pooled = jnp.max(s.reshape(bt, seq_len, FP), axis=1)         # (bt, FP)
    feats = jnp.maximum(pooled, 0.0)

    out = jnp.dot(feats, wo_ref[...], preferred_element_type=jnp.float32)
    out_ref[...] = (out + bo_ref[...]).astype(out_ref.dtype)


# ----------------------------------------------------------------------------
# wrapper
# ----------------------------------------------------------------------------
@functools.partial(jax.jit, static_argnames=("filter_widths", "compute_dtype"))
def conv_classifier_forward(token_ids, params, filter_widths,
                            compute_dtype=jnp.bfloat16):
    """forward() of ConvClassifier. token_ids: (B, L) int32 -> (B, rep) f32."""
    emb_table = params["emb"]
    B, L = token_ids.shape
    E = emb_table.shape[1]
    F = params["w1"].shape[-1]
    rep = params["wo"].shape[-1]
    n_f = len(filter_widths)
    w_max = max(filter_widths)
    if L < w_max:
        raise ValueError(f"sequence length {L} < widest filter {w_max}")

    L_pad = _round_up(L, 8)                  # layout-friendly time axis
    FP = _round_up(n_f * F, 128)             # lane-dense fused conv width
    RP = _round_up(rep, 128)                 # lane-dense head width
    NEG = -1e30

    # ---- one-time parameter packing (plain XLA; in a real model do this once
    # at load time, not per call) ---------------------------------------------
    wf = jnp.zeros((w_max, E, FP), jnp.float32)
    bias_mask = jnp.full((L_pad, FP), NEG, jnp.float32)
    for g, width in enumerate(filter_widths):
        w_g = params[f"w{g + 1}"]                          # (width, E, F)
        b_g = params[f"b{g + 1}"]                          # (1, F)
        col = slice(g * F, (g + 1) * F)
        wf = wf.at[:width, :, col].set(w_g)
        l_out = L - width + 1                              # valid conv positions
        bias_mask = bias_mask.at[:l_out, col].set(
            jnp.broadcast_to(b_g, (l_out, F)))
    wf_flat = wf.reshape(w_max * E, FP).astype(compute_dtype)
    wo_p = jnp.zeros((FP, RP), jnp.float32).at[:n_f * F, :rep].set(params["wo"])
    bo_p = jnp.zeros((1, RP), jnp.float32).at[:, :rep].set(params["bo"])

    # ---- embedding gather (kept in the wrapper) ------------------------------
    # TODO(synk): fuse the gather in-kernel (scalar-prefetch token ids + one-hot
    # matmul or a manual DMA gather) to avoid the extra (B,L,E) HBM round trip.
    emb = jnp.take(emb_table, token_ids, axis=0).astype(compute_dtype)  # (B,L,E)
    if L_pad != L:
        emb = jnp.pad(emb, ((0, 0), (0, L_pad - L), (0, 0)))

    # ---- batch tiling --------------------------------------------------------
    b_tile, n_tiles = _pick_batch_tiling(B, L_pad)
    B_pad = b_tile * n_tiles
    if B_pad != B:
        emb = jnp.pad(emb, ((0, B_pad - B), (0, 0), (0, 0)))
    rows = b_tile * L_pad
    emb2d = emb.reshape(B_pad * L_pad, E)                  # flat (batch*time, E)
    bm_tiled = jnp.tile(bias_mask, (b_tile, 1))            # (rows, FP)

    kernel = functools.partial(fused_convpool_kernel, w_max=w_max, seq_len=L_pad)

    out = pl.pallas_call(
        kernel,
        out_shape=jax.ShapeDtypeStruct((B_pad, RP), jnp.float32),
        grid=(n_tiles,),
        in_specs=[
            pl.BlockSpec((rows, E), lambda i: (i, 0)),         # batch tile
            # constant index maps -> resident in VMEM across all grid steps
            pl.BlockSpec((w_max * E, FP), lambda i: (0, 0)),   # fused conv weight
            pl.BlockSpec((rows, FP), lambda i: (0, 0)),        # bias + validity mask
            pl.BlockSpec((FP, RP), lambda i: (0, 0)),          # head weight
            pl.BlockSpec((1, RP), lambda i: (0, 0)),           # head bias
        ],
        out_specs=pl.BlockSpec((b_tile, RP), lambda i: (i, 0)),
        compiler_params=pltpu.CompilerParams(
            dimension_semantics=("parallel",),        # batch tiles across v7x TCs
            vmem_limit_bytes=32 * 1024 * 1024,        # headroom vs v7x 64 MiB phys
        ),
    )(emb2d, wf_flat, bm_tiled, wo_p, bo_p)

    return out[:B, :rep]


# ----------------------------------------------------------------------------
# pure-JAX reference (PyTorch semantics) and parameter construction
# ----------------------------------------------------------------------------
def reference_forward(token_ids, params, filter_widths):
    emb = jnp.take(params["emb"], token_ids, axis=0)           # (B, L, E)
    L = emb.shape[1]
    feats = []
    for name, width in zip(("w1", "w2", "w3"), filter_widths):
        w = params[name]                                       # (width, E, F)
        b = params[name.replace("w", "b")]                     # (1, F)
        l_out = L - width + 1
        acc = sum(jnp.einsum("ble,ef->blf", emb[:, k:k + l_out, :], w[k])
                  for k in range(width)) + b[None, :, :]
        acc = jnp.maximum(acc, 0.0)
        feats.append(jnp.max(acc, axis=1))                     # (B, F)
    cat = jnp.concatenate(feats, axis=-1)
    return cat @ params["wo"] + params["bo"]


def make_params(key, vocab_size, emb_dim, filter_size, filter_widths, rep_dim):
    ks = jax.random.split(key, 9)
    scale = 0.1
    return {
        "emb": jax.random.normal(ks[0], (vocab_size, emb_dim), jnp.float32) * scale,
        "w1": jax.random.normal(ks[1], (filter_widths[0], emb_dim, filter_size), jnp.float32) * scale,
        "b1": jax.random.normal(ks[2], (1, filter_size), jnp.float32) * scale,
        "w2": jax.random.normal(ks[3], (filter_widths[1], emb_dim, filter_size), jnp.float32) * scale,
        "b2": jax.random.normal(ks[4], (1, filter_size), jnp.float32) * scale,
        "w3": jax.random.normal(ks[5], (filter_widths[2], emb_dim, filter_size), jnp.float32) * scale,
        "b3": jax.random.normal(ks[6], (1, filter_size), jnp.float32) * scale,
        "wo": jax.random.normal(ks[7], (len(filter_widths) * filter_size, rep_dim), jnp.float32) * scale,
        "bo": jax.random.normal(ks[8], (1, rep_dim), jnp.float32) * scale,
    }


if __name__ == "__main__":
    # Small, module-consistent shapes.
    n_classes = 4                     # clf head is not part of forward()
    filter_size = 8
    filter_widths = (3, 4, 5)
    vocab_size = 32
    emb_dimension = 16
    rep_dimension = 32
    batch, seq_len = 2, 16

    root = jax.random.PRNGKey(0)
    k_params, k_tokens = jax.random.split(root)
    params = make_params(k_params, vocab_size, emb_dimension,
                         filter_size, filter_widths, rep_dimension)
    token_ids = jax.random.randint(k_tokens, (batch, seq_len), 0, vocab_size,
                                   dtype=jnp.int32)

    out = conv_classifier_forward(token_ids, params, filter_widths)
    out = jax.block_until_ready(out)
    assert out.shape == (batch, rep_dimension)
    assert bool(jnp.all(jnp.isfinite(out)))

    # Reference in f32 on bf16-rounded embeddings / conv weights (exactly what
    # the kernel consumes); head stays f32 in both paths.
    rt = lambda a: a.astype(jnp.bfloat16).astype(jnp.float32)
    params_r = dict(params)
    for name in ("emb", "w1", "w2", "w3"):
        params_r[name] = rt(params[name])
    ref = reference_forward(token_ids, params_r, filter_widths)

    assert jnp.allclose(out, ref, atol=1e-3, rtol=1e-2), (
        "kernel/reference mismatch, max abs err = "
        f"{float(jnp.max(jnp.abs(out - ref)))}")

    print("KERNEL_OK")
</pallas_src>

<mosaic_0001>
module attributes {stable_mosaic.version = 11 : i64} {
  func.func @fused_convpool_kernel(%arg0: i32, %arg1: memref<128x16xbf16, #tpu.memory_space<vmem>>, %arg2: memref<80x128xbf16, #tpu.memory_space<vmem>>, %arg3: memref<128x128xf32, #tpu.memory_space<vmem>>, %arg4: memref<128x128xf32, #tpu.memory_space<vmem>>, %arg5: memref<1x128xf32, #tpu.memory_space<vmem>>, %arg6: memref<8x128xf32, #tpu.memory_space<vmem>>) attributes {dimension_semantics = [#tpu.dimension_semantics<parallel>], iteration_bounds = array<i64: 2>, scalar_prefetch = 0 : i64, scratch_operands = 0 : i64, tpu.core_type = #tpu.core_type<tc>, window_params = [{transform_indices = @transform_0, window_bounds = array<i64: 128, 16>}, {pipeline_mode = #tpu.pipeline_mode<synchronous>, transform_indices = @transform_1, window_bounds = array<i64: 80, 128>}, {pipeline_mode = #tpu.pipeline_mode<synchronous>, transform_indices = @transform_2, window_bounds = array<i64: 128, 128>}, {pipeline_mode = #tpu.pipeline_mode<synchronous>, transform_indices = @transform_3, window_bounds = array<i64: 128, 128>}, {pipeline_mode = #tpu.pipeline_mode<synchronous>, transform_indices = @transform_4, window_bounds = array<i64: 1, 128>}, {transform_indices = @transform_5, window_bounds = array<i64: 8, 128>}]} {
    %c0 = arith.constant 0 : index
    %c0_0 = arith.constant 0 : index
    %0 = vector.load %arg1[%c0, %c0_0] : memref<128x16xbf16, #tpu.memory_space<vmem>>, vector<128x16xbf16>
    %1 = arith.extf %0 : vector<128x16xbf16> to vector<128x16xf32>
    %2 = vector.extract_strided_slice %1 {offsets = [1, 0], sizes = [127, 16], strides = [1, 1]} : vector<128x16xf32> to vector<127x16xf32>
    %cst = arith.constant 0.000000e+00 : f32
    %3 = vector.broadcast %cst : f32 to vector<1x16xf32>
    %4 = tpu.concatenate %2, %3 in 0 : vector<127x16xf32>, vector<1x16xf32> -> vector<128x16xf32>
    %5 = vector.extract_strided_slice %1 {offsets = [2, 0], sizes = [126, 16], strides = [1, 1]} : vector<128x16xf32> to vector<126x16xf32>
    %cst_1 = arith.constant 0.000000e+00 : f32
    %6 = vector.broadcast %cst_1 : f32 to vector<2x16xf32>
    %7 = tpu.concatenate %5, %6 in 0 : vector<126x16xf32>, vector<2x16xf32> -> vector<128x16xf32>
    %8 = vector.extract_strided_slice %1 {offsets = [3, 0], sizes = [125, 16], strides = [1, 1]} : vector<128x16xf32> to vector<125x16xf32>
    %cst_2 = arith.constant 0.000000e+00 : f32
    %9 = vector.broadcast %cst_2 : f32 to vector<3x16xf32>
    %10 = tpu.concatenate %8, %9 in 0 : vector<125x16xf32>, vector<3x16xf32> -> vector<128x16xf32>
    %11 = vector.extract_strided_slice %1 {offsets = [4, 0], sizes = [124, 16], strides = [1, 1]} : vector<128x16xf32> to vector<124x16xf32>
    %cst_3 = arith.constant 0.000000e+00 : f32
    %12 = vector.broadcast %cst_3 : f32 to vector<4x16xf32>
    %13 = tpu.concatenate %11, %12 in 0 : vector<124x16xf32>, vector<4x16xf32> -> vector<128x16xf32>
    %14 = tpu.concatenate %1, %4, %7, %10, %13 in 1 : vector<128x16xf32>, vector<128x16xf32>, vector<128x16xf32>, vector<128x16xf32>, vector<128x16xf32> -> vector<128x80xf32>
    %15 = arith.truncf %14 : vector<128x80xf32> to vector<128x80xbf16>
    %c0_4 = arith.constant 0 : index
    %c0_5 = arith.constant 0 : index
    %16 = vector.load %arg2[%c0_4, %c0_5] : memref<80x128xbf16, #tpu.memory_space<vmem>>, vector<80x128xbf16>
    %cst_6 = arith.constant dense<0.000000e+00> : vector<128x128xf32>
    %17 = tpu.matmul %15, %16, %cst_6 {dimension_numbers = #tpu.dot_dimension_numbers<[1], [0], [0], [1], [0, 0, 1, 1], [], []>} : vector<128x80xbf16>, vector<80x128xbf16>, vector<128x128xf32> -> vector<128x128xf32>
    %c0_7 = arith.constant 0 : index
    %c0_8 = arith.constant 0 : index
    %18 = vector.load %arg3[%c0_7, %c0_8] : memref<128x128xf32, #tpu.memory_space<vmem>>, vector<128x128xf32>
    %19 = arith.addf %17, %18 : vector<128x128xf32>
    %20 = vector.shape_cast %19 : vector<128x128xf32> to vector<8x16x128xf32>
    %cst_9 = arith.constant dense<0xFF800000> : vector<8x128xf32>
    %21 = vector.multi_reduction <maximumf>, %20, %cst_9 [1] : vector<8x16x128xf32> to vector<8x128xf32>
    %cst_10 = arith.constant 0.000000e+00 : f32
    %22 = vector.broadcast %cst_10 : f32 to vector<8x128xf32>
    %23 = arith.maximumf %21, %22 : vector<8x128xf32>
    %c0_11 = arith.constant 0 : index
    %c0_12 = arith.constant 0 : index
    %24 = vector.load %arg4[%c0_11, %c0_12] : memref<128x128xf32, #tpu.memory_space<vmem>>, vector<128x128xf32>
    %cst_13 = arith.constant dense<0.000000e+00> : vector<8x128xf32>
    %25 = tpu.matmul %23, %24, %cst_13 {dimension_numbers = #tpu.dot_dimension_numbers<[1], [0], [0], [1], [0, 0, 1, 1], [], []>} : vector<8x128xf32>, vector<128x128xf32>, vector<8x128xf32> -> vector<8x128xf32>
    %c0_14 = arith.constant 0 : index
    %c0_15 = arith.constant 0 : index
    %26 = vector.load %arg5[%c0_14, %c0_15] : memref<1x128xf32, #tpu.memory_space<vmem>>, vector<1x128xf32>
    %27 = vector.broadcast %26 : vector<1x128xf32> to vector<8x128xf32>
    %28 = arith.addf %25, %27 : vector<8x128xf32>
    %c0_16 = arith.constant 0 : index
    %c0_17 = arith.constant 0 : index
    %29 = vector.load %arg6[%c0_16, %c0_17] : memref<8x128xf32, #tpu.memory_space<vmem>>, vector<8x128xf32>
    tpu.vector_store %arg6[%c0_16, %c0_17], %28 {strides = array<i32>} : memref<8x128xf32, #tpu.memory_space<vmem>>, vector<8x128xf32>,
    return
  }
  func.func @transform_0(%arg0: i32) -> (i32, i32) {
    %c0_i32 = arith.constant 0 : i32
    %c0_i32_0 = arith.constant 0 : i32
    return %arg0, %c0_i32 : i32, i32
  }
  func.func @transform_1(%arg0: i32) -> (i32, i32) {
    %c0_i32 = arith.constant 0 : i32
    %c0_i32_0 = arith.constant 0 : i32
    %c0_i32_1 = arith.constant 0 : i32
    return %c0_i32, %c0_i32_0 : i32, i32
  }
  func.func @transform_2(%arg0: i32) -> (i32, i32) {
    %c0_i32 = arith.constant 0 : i32
    %c0_i32_0 = arith.constant 0 : i32
    %c0_i32_1 = arith.constant 0 : i32
    return %c0_i32, %c0_i32_0 : i32, i32
  }
  func.func @transform_3(%arg0: i32) -> (i32, i32) {
    %c0_i32 = arith.constant 0 : i32
    %c0_i32_0 = arith.constant 0 : i32
    %c0_i32_1 = arith.constant 0 : i32
    return %c0_i32, %c0_i32_0 : i32, i32
  }
  func.func @transform_4(%arg0: i32) -> (i32, i32) {
    %c0_i32 = arith.constant 0 : i32
    %c0_i32_0 = arith.constant 0 : i32
    %c0_i32_1 = arith.constant 0 : i32
    return %c0_i32, %c0_i32_0 : i32, i32
  }
  func.func @transform_5(%arg0: i32) -> (i32, i32) {
    %c0_i32 = arith.constant 0 : i32
    %c0_i32_0 = arith.constant 0 : i32
    return %arg0, %c0_i32 : i32, i32
  }
}

</mosaic_0001>

<llo_original>
// kernel: conv_classifier_forward.1
$region0: #{conv_classifier_forward.1}
  #allocation0 [shape = 'u32[]', space=smem, size = 0x4, offset = 0x4, fixed_abs, tag = 'smem constant byte address 0x4 - core index']
  #allocation1 [shape = 'u32[144,128]{1,0:T(1,128)}', space=vmem, size = 0x12000, scoped, tag = 'internal scratch']
  %s0 = inlined_call_operand.vmem [shape: bf16[256,16], index: 0, kind: input, shape index: {}]
  %s1 = inlined_call_operand.vmem [shape: bf16[80,128], index: 1, kind: input, shape index: {}]
  %s2 = inlined_call_operand.vmem [shape: f32[128,128], index: 2, kind: input, shape index: {}]
  %s3 = inlined_call_operand.vmem [shape: f32[128,128], index: 3, kind: input, shape index: {}]
  %s4 = inlined_call_operand.vmem [shape: f32[1,128], index: 4, kind: input, shape index: {}]
  %s5 = inlined_call_operand.vmem [shape: f32[16,128], index: 5, kind: output, shape index: {}]
  %s6 = sld [smem:[#allocation0]]
  $region53: #{conv_classifier_forward.1} parent=0
    _
  %s8 = ssub.s32 1, %s6
  %s9 = scalar_select 0, %s8, %s6
  loop: start=0, step=1, limit=4
  $region2: #{conv_classifier_forward.1} parent=0 // loop_pre_header
    _
  $region3: #{conv_classifier_forward.1} parent=0 // loop_header
    %s11 = sphi 0, %s15
    %p12 = scmp.ge.s32.totalorder %s11, 4
    %s21 = sphi 0, %s23
    %s24 = sphi 0, %s21
    %s25 = sphi 0, %s24
    %s41 = sphi 0, %s25
    %s45 = sphi 0, %s45
    %s47 = sphi 0, %s45
    %s48 = sphi 0, %s47
    %s62 = sphi 0, %s48
    %s66 = sphi 0, %s66
    %s68 = sphi 0, %s66
    %s69 = sphi 0, %s68
    %s83 = sphi 0, %s69
    %s87 = sphi 0, %s87
    %s89 = sphi 0, %s87
    %s90 = sphi 0, %s89
    %s104 = sphi 0, %s90
    %s108 = sphi 0, %s108
    %s110 = sphi 0, %s108
    %s111 = sphi 0, %s110
    %s125 = sphi 0, %s111
    %s131 = sphi 0, %s133
    %s134 = sphi 0, %s131
    %s135 = sphi 0, %s134
    %s151 = sphi 0, %s135
  $region4: #{conv_classifier_forward.1} parent=0 // loop_header_branch
    %14 = sbr.rel (%p12) target = $region8
  $region5: #{conv_classifier_forward.1} parent=0 // loop_body
    %s16 = ssub.s32 %s11, 1
    %s17 = ssub.s32 %s11, 2
    %s18 = sadd.s32 %s11, 1
    %s19 = ssub.s32 %s11, %s18
    %p20 = scmp.eq.s32.totalorder %s19, 0
    %s22 = sadd.s32 %s21, 1
    %s23 = scalar_select %p20, %s21, %s22
    %p26 = pneg %p20
    %p27 = scmp.eq.s32.totalorder %s11, 1
    %p28 = por %p26, %p27
    %p29 = scmp.ne.s32.totalorder %s21, %s24
    %p30 = scmp.eq.s32.totalorder %s11, 0
    %p31 = por %p29, %p30
    %p32 = scmp.ne.s32.totalorder %s21, %s24
    %p33 = scmp.eq.s32.totalorder %s16, 1
    %p34 = por %p32, %p33
    %p35 = scmp.ne.s32.totalorder %s24, %s25
    %p36 = scmp.eq.s32.totalorder %s16, 0
    %p37 = por %p35, %p36
    %p38 = scmp.ne.s32.totalorder %s24, %s25
    %p39 = scmp.eq.s32.totalorder %s17, 1
    %p40 = por %p38, %p39
    %p42 = scmp.ne.s32.totalorder %s25, %s41
    %p43 = scmp.eq.s32.totalorder %s17, 0
    %p44 = por %p42, %p43
    %s46 = sadd.s32 %s45, 1
    %p49 = scmp.eq.s32.totalorder %s11, 1
    %p50 = scmp.ne.s32.totalorder %s45, %s47
    %p51 = scmp.eq.s32.totalorder %s11, 0
    %p52 = por %p50, %p51
    %p53 = scmp.ne.s32.totalorder %s45, %s47
    %p54 = scmp.eq.s32.totalorder %s16, 1
    %p55 = por %p53, %p54
    %p56 = scmp.ne.s32.totalorder %s47, %s48
    %p57 = scmp.eq.s32.totalorder %s16, 0
    %p58 = por %p56, %p57
    %p59 = scmp.ne.s32.totalorder %s47, %s48
    %p60 = scmp.eq.s32.totalorder %s17, 1
    %p61 = por %p59, %p60
    %p63 = scmp.ne.s32.totalorder %s48, %s62
    %p64 = scmp.eq.s32.totalorder %s17, 0
    %p65 = por %p63, %p64
    %s67 = sadd.s32 %s66, 1
    %p70 = scmp.eq.s32.totalorder %s11, 1
    %p71 = scmp.ne.s32.totalorder %s66, %s68
    %p72 = scmp.eq.s32.totalorder %s11, 0
    %p73 = por %p71, %p72
    %p74 = scmp.ne.s32.totalorder %s66, %s68
    %p75 = scmp.eq.s32.totalorder %s16, 1
    %p76 = por %p74, %p75
    %p77 = scmp.ne.s32.totalorder %s68, %s69
    %p78 = scmp.eq.s32.totalorder %s16, 0
    %p79 = por %p77, %p78
    %p80 = scmp.ne.s32.totalorder %s68, %s69
    %p81 = scmp.eq.s32.totalorder %s17, 1
    %p82 = por %p80, %p81
    %p84 = scmp.ne.s32.totalorder %s69, %s83
    %p85 = scmp.eq.s32.totalorder %s17, 0
    %p86 = por %p84, %p85
    %s88 = sadd.s32 %s87, 1
    %p91 = scmp.eq.s32.totalorder %s11, 1
    %p92 = scmp.ne.s32.totalorder %s87, %s89
    %p93 = scmp.eq.s32.totalorder %s11, 0
    %p94 = por %p92, %p93
    %p95 = scmp.ne.s32.totalorder %s87, %s89
    %p96 = scmp.eq.s32.totalorder %s16, 1
    %p97 = por %p95, %p96
    %p98 = scmp.ne.s32.totalorder %s89, %s90
    %p99 = scmp.eq.s32.totalorder %s16, 0
    %p100 = por %p98, %p99
    %p101 = scmp.ne.s32.totalorder %s89, %s90
    %p102 = scmp.eq.s32.totalorder %s17, 1
    %p103 = por %p101, %p102
    %p105 = scmp.ne.s32.totalorder %s90, %s104
    %p106 = scmp.eq.s32.totalorder %s17, 0
    %p107 = por %p105, %p106
    %s109 = sadd.s32 %s108, 1
    %p112 = scmp.eq.s32.totalorder %s11, 1
    %p113 = scmp.ne.s32.totalorder %s108, %s110
    %p114 = scmp.eq.s32.totalorder %s11, 0
    %p115 = por %p113, %p114
    %p116 = scmp.ne.s32.totalorder %s108, %s110
    %p117 = scmp.eq.s32.totalorder %s16, 1
    %p118 = por %p116, %p117
    %p119 = scmp.ne.s32.totalorder %s110, %s111
    %p120 = scmp.eq.s32.totalorder %s16, 0
    %p121 = por %p119, %p120
    %p122 = scmp.ne.s32.totalorder %s110, %s111
    %p123 = scmp.eq.s32.totalorder %s17, 1
    %p124 = por %p122, %p123
    %p126 = scmp.ne.s32.totalorder %s111, %s125
    %p127 = scmp.eq.s32.totalorder %s17, 0
    %p128 = por %p126, %p127
    %s129 = ssub.s32 %s11, %s18
    %p130 = scmp.eq.s32.totalorder %s129, 0
    %s132 = sadd.s32 %s131, 1
    %s133 = scalar_select %p130, %s131, %s132
    %p136 = pneg %p130
    %p137 = scmp.eq.s32.totalorder %s11, 1
    %p138 = por %p136, %p137
    %p139 = scmp.ne.s32.totalorder %s131, %s134
    %p140 = scmp.eq.s32.totalorder %s11, 0
    %p141 = por %p139, %p140
    %p142 = scmp.ne.s32.totalorder %s131, %s134
    %p143 = scmp.eq.s32.totalorder %s16, 1
    %p144 = por %p142, %p143
    %p145 = scmp.ne.s32.totalorder %s134, %s135
    %p146 = scmp.eq.s32.totalorder %s16, 0
    %p147 = por %p145, %p146
    %p148 = scmp.ne.s32.totalorder %s134, %s135
    %p149 = scmp.eq.s32.totalorder %s17, 1
    %p150 = por %p148, %p149
    %p152 = scmp.ne.s32.totalorder %s135, %s151
    %p153 = scmp.eq.s32.totalorder %s17, 0
    %p154 = por %p152, %p153
    %p155 = scmp.le.s32.totalorder 1, %s11
    %p156 = scmp.lt.s32.totalorder %s11, 3
    %p157 = pnand %p155, %p156
    %p158 = pneg %p157
    // Predicated region
    $region9: #{conv_classifier_forward.1} parent=5 // pred_check
      _
    $region10: #{conv_classifier_forward.1} parent=5 // pred_check_branch
      %160 = sbr.rel (%p157) target = $region12
    $region11: #{conv_classifier_forward.1} parent=5 // pred_region
      %s161 = ssub.s32 %s11, 1
      // Predicated region
      $region13: #{conv_classifier_forward.1} parent=11 // pred_check
        %p162 = pneg %p58
      $region14: #{conv_classifier_forward.1} parent=11 // pred_check_branch
        %164 = sbr.rel (%p162) target = $region16
      $region15: #{conv_classifier_forward.1} parent=11 // pred_region
        _
      $region16: #{conv_classifier_forward.1} parent=11 // pred_fallthru
        _
      // Predicated region
      $region17: #{conv_classifier_forward.1} parent=11 // pred_check
        %p165 = pneg %p79
      $region18: #{conv_classifier_forward.1} parent=11 // pred_check_branch
        %167 = sbr.rel (%p165) target = $region20
      $region19: #{conv_classifier_forward.1} parent=11 // pred_region
        _
      $region20: #{conv_classifier_forward.1} parent=11 // pred_fallthru
        _
      // Predicated region
      $region21: #{conv_classifier_forward.1} parent=11 // pred_check
        %p168 = pneg %p100
      $region22: #{conv_classifier_forward.1} parent=11 // pred_check_branch
        %170 = sbr.rel (%p168) target = $region24
      $region23: #{conv_classifier_forward.1} parent=11 // pred_region
        _
      $region24: #{conv_classifier_forward.1} parent=11 // pred_fallthru
        _
      // Predicated region
      $region25: #{conv_classifier_forward.1} parent=11 // pred_check
        %p171 = pneg %p121
      $region26: #{conv_classifier_forward.1} parent=11 // pred_check_branch
        %173 = sbr.rel (%p171) target = $region28
      $region27: #{conv_classifier_forward.1} parent=11 // pred_region
        _
      $region28: #{conv_classifier_forward.1} parent=11 // pred_fallthru
        _
    $region12: #{conv_classifier_forward.1} parent=5 // pred_fallthru
      _
    %p174 = scmp.lt.s32.totalorder %s11, 2
    // Predicated region
    $region29: #{conv_classifier_forward.1} parent=5 // pred_check
      %p175 = pneg %p174
    $region30: #{conv_classifier_forward.1} parent=5 // pred_check_branch
      %177 = sbr.rel (%p175) target = $region32
    $region31: #{conv_classifier_forward.1} parent=5 // pred_region
      // Predicated region
      $region33: #{conv_classifier_forward.1} parent=31 // pred_check
        %p178 = pneg %p31
      $region34: #{conv_classifier_forward.1} parent=31 // pred_check_branch
        %180 = sbr.rel (%p178) target = $region36
      $region35: #{conv_classifier_forward.1} parent=31 // pred_region
        %s181 = smul.u32 16, %s11
        %p182 = scmp.lt.s32.totalorder %s181, 31
        %s183 = scalar_select %p182, %s181, 31
        %s184 = smul.addr %s183, 4
        %s185 = scalar_lea.vmem %s0, %s184
        %s186 = smul.u32 16, %s11
      $region36: #{conv_classifier_forward.1} parent=31 // pred_fallthru
        _
    $region32: #{conv_classifier_forward.1} parent=5 // pred_fallthru
      _
    %p187 = scmp.le.s32.totalorder 1, %s11
    %p188 = scmp.lt.s32.totalorder %s11, 3
    %p189 = pnand %p187, %p188
    %p190 = pneg %p189
    // Predicated region
    $region37: #{conv_classifier_forward.1} parent=5 // pred_check
      _
    $region38: #{conv_classifier_forward.1} parent=5 // pred_check_branch
      %192 = sbr.rel (%p189) target = $region40
    $region39: #{conv_classifier_forward.1} parent=5 // pred_region
      %s193 = ssub.s32 %s11, 1
      %s194 = smul.u32 16, %s16
      %p195 = scmp.lt.s32.totalorder %s194, 31
      %s196 = scalar_select %p195, %s194, 31
      %s197 = smul.addr %s196, 4
      %s198 = scalar_lea.vmem %s0, %s197
      %p199 = pneg %p37
      %p200 = pneg %p34
      %p201 = pneg %p58
      %p202 = pneg %p55
      %p203 = pneg %p79
      %p204 = pneg %p76
      %p205 = pneg %p100
      %p206 = pneg %p97
      %p207 = pneg %p121
      %p208 = pneg %p118
      %p209 = pneg %p147
      %p210 = pneg %p144
      %p211 = scmp.lt.s32.totalorder %s16, 1
      %s212 = scalar_select %p211, %s16, 1
      %s213 = smul.addr %s212, 8
      %s214 = scalar_lea.vmem %s5, %s213
      %s215 = smul.u32 16, %s16
      %p216 = scmp.lt.s32.totalorder %s215, 31
      %s217 = scalar_select %p216, %s215, 31
      %s218 = smul.addr %s217, 4
      %s219 = scalar_lea.vmem %s0, %s218
      %s220 = smul.u32 16, %s16
      %p221 = scmp.lt.s32.totalorder %s16, 1
      %s222 = scalar_select %p221, %s16, 1
      %s223 = smul.addr %s222, 8
      %s224 = scalar_lea.vmem %s5, %s223
      %v226 = vld [vmem:[%s219] sm:$0xf]
      %v227 = vld [vmem:[%s219 + $0x4] sm:$0xf]
      %v228 = vld [vmem:[%s219 + $0x8] sm:$0xf]
      %v229 = vld [vmem:[%s219 + $0xc] sm:$0xf]
      %v230 = vld [vmem:[%s219 + $0x10] sm:$0xf]
      %v231 = vld [vmem:[%s219 + $0x14] sm:$0xf]
      %v232 = vld [vmem:[%s219 + $0x18] sm:$0xf]
      %v233 = vld [vmem:[%s219 + $0x1c] sm:$0xf]
      %v234 = vld [vmem:[%s219 + $0x20] sm:$0xf]
      %v235 = vld [vmem:[%s219 + $0x24] sm:$0xf]
      %v236 = vld [vmem:[%s219 + $0x28] sm:$0xf]
      %v237 = vld [vmem:[%s219 + $0x2c] sm:$0xf]
      %v238 = vld [vmem:[%s219 + $0x30] sm:$0xf]
      %v239 = vld [vmem:[%s219 + $0x34] sm:$0xf]
      %v240 = vld [vmem:[%s219 + $0x38] sm:$0xf]
      %v241 = vld [vmem:[%s219 + $0x3c] sm:$0xf]
      %v242 = vunpack.c.l.bf16 %v226
      %v243 = vunpack.c.l.bf16 %v227
      %v244 = vunpack.c.l.bf16 %v228
      %v245 = vunpack.c.l.bf16 %v229
      %v246 = vunpack.c.l.bf16 %v230
      %v247 = vunpack.c.l.bf16 %v231
      %v248 = vunpack.c.l.bf16 %v232
      %v249 = vunpack.c.l.bf16 %v233
      %v250 = vunpack.c.l.bf16 %v234
      %v251 = vunpack.c.l.bf16 %v235
      %v252 = vunpack.c.l.bf16 %v236
      %v253 = vunpack.c.l.bf16 %v237
      %v254 = vunpack.c.l.bf16 %v238
      %v255 = vunpack.c.l.bf16 %v239
      %v256 = vunpack.c.l.bf16 %v240
      %v257 = vunpack.c.l.bf16 %v241
      %vm274 = vcmask 1046528
      %v275 = vrot.slane %v242, 1
      %v276 = vrot.slane %v243, 1
      %v277 = vsel %vm274, %v275, %v276
      %v278 = vrot.slane %v244, 1
      %v279 = vsel %vm274, %v276, %v278
      %v280 = vrot.slane %v245, 1
      %v281 = vsel %vm274, %v278, %v280
      %v282 = vrot.slane %v246, 1
      %v283 = vsel %vm274, %v280, %v282
      %v284 = vrot.slane %v247, 1
      %v285 = vsel %vm274, %v282, %v284
      %v286 = vrot.slane %v248, 1
      %v287 = vsel %vm274, %v284, %v286
      %v288 = vrot.slane %v249, 1
      %v289 = vsel %vm274, %v286, %v288
      %v290 = vrot.slane %v250, 1
      %v291 = vsel %vm274, %v288, %v290
      %v292 = vrot.slane %v251, 1
      %v293 = vsel %vm274, %v290, %v292
      %v294 = vrot.slane %v252, 1
      %v295 = vsel %vm274, %v292, %v294
      %v296 = vrot.slane %v253, 1
      %v297 = vsel %vm274, %v294, %v296
      %v298 = vrot.slane %v254, 1
      %v299 = vsel %vm274, %v296, %v298
      %v300 = vrot.slane %v255, 1
      %v301 = vsel %vm274, %v298, %v300
      %v302 = vrot.slane %v256, 1
      %v303 = vsel %vm274, %v300, %v302
      %v304 = vrot.slane %v257, 1
      %v305 = vsel %vm274, %v302, %v304
      %v307 = vsel %vm274, %v304, 0.0
      %vm308 = vcmask 1045504
      %v309 = vrot.slane %v242, 2
      %v310 = vrot.slane %v243, 2
      %v311 = vsel %vm308, %v309, %v310
      %v312 = vrot.slane %v244, 2
      %v313 = vsel %vm308, %v310, %v312
      %v314 = vrot.slane %v245, 2
      %v315 = vsel %vm308, %v312, %v314
      %v316 = vrot.slane %v246, 2
      %v317 = vsel %vm308, %v314, %v316
      %v318 = vrot.slane %v247, 2
      %v319 = vsel %vm308, %v316, %v318
      %v320 = vrot.slane %v248, 2
      %v321 = vsel %vm308, %v318, %v320
      %v322 = vrot.slane %v249, 2
      %v323 = vsel %vm308, %v320, %v322
      %v324 = vrot.slane %v250, 2
      %v325 = vsel %vm308, %v322, %v324
      %v326 = vrot.slane %v251, 2
      %v327 = vsel %vm308, %v324, %v326
      %v328 = vrot.slane %v252, 2
      %v329 = vsel %vm308, %v326, %v328
      %v330 = vrot.slane %v253, 2
      %v331 = vsel %vm308, %v328, %v330
      %v332 = vrot.slane %v254, 2
      %v333 = vsel %vm308, %v330, %v332
      %v334 = vrot.slane %v255, 2
      %v335 = vsel %vm308, %v332, %v334
      %v336 = vrot.slane %v256, 2
      %v337 = vsel %vm308, %v334, %v336
      %v338 = vrot.slane %v257, 2
      %v339 = vsel %vm308, %v336, %v338
      %v341 = vsel %vm308, %v338, 0.0
      %vm342 = vcmask 1044480
      %v343 = vrot.slane %v242, 3
      %v344 = vrot.slane %v243, 3
      %v345 = vsel %vm342, %v343, %v344
      %v346 = vrot.slane %v244, 3
      %v347 = vsel %vm342, %v344, %v346
      %v348 = vrot.slane %v245, 3
      %v349 = vsel %vm342, %v346, %v348
      %v350 = vrot.slane %v246, 3
      %v351 = vsel %vm342, %v348, %v350
      %v352 = vrot.slane %v247, 3
      %v353 = vsel %vm342, %v350, %v352
      %v354 = vrot.slane %v248, 3
      %v355 = vsel %vm342, %v352, %v354
      %v356 = vrot.slane %v249, 3
      %v357 = vsel %vm342, %v354, %v356
      %v358 = vrot.slane %v250, 3
      %v359 = vsel %vm342, %v356, %v358
      %v360 = vrot.slane %v251, 3
      %v361 = vsel %vm342, %v358, %v360
      %v362 = vrot.slane %v252, 3
      %v363 = vsel %vm342, %v360, %v362
      %v364 = vrot.slane %v253, 3
      %v365 = vsel %vm342, %v362, %v364
      %v366 = vrot.slane %v254, 3
      %v367 = vsel %vm342, %v364, %v366
      %v368 = vrot.slane %v255, 3
      %v369 = vsel %vm342, %v366, %v368
      %v370 = vrot.slane %v256, 3
      %v371 = vsel %vm342, %v368, %v370
      %v372 = vrot.slane %v257, 3
      %v373 = vsel %vm342, %v370, %v372
      %v375 = vsel %vm342, %v372, 0.0
      %vm376 = vcmask 1043456
      %v377 = vrot.slane %v242, 4
      %v378 = vrot.slane %v243, 4
      %v379 = vsel %vm376, %v377, %v378
      %v380 = vrot.slane %v244, 4
      %v381 = vsel %vm376, %v378, %v380
      %v382 = vrot.slane %v245, 4
      %v383 = vsel %vm376, %v380, %v382
      %v384 = vrot.slane %v246, 4
      %v385 = vsel %vm376, %v382, %v384
      %v386 = vrot.slane %v247, 4
      %v387 = vsel %vm376, %v384, %v386
      %v388 = vrot.slane %v248, 4
      %v389 = vsel %vm376, %v386, %v388
      %v390 = vrot.slane %v249, 4
      %v391 = vsel %vm376, %v388, %v390
      %v392 = vrot.slane %v250, 4
      %v393 = vsel %vm376, %v390, %v392
      %v394 = vrot.slane %v251, 4
      %v395 = vsel %vm376, %v392, %v394
      %v396 = vrot.slane %v252, 4
      %v397 = vsel %vm376, %v394, %v396
      %v398 = vrot.slane %v253, 4
      %v399 = vsel %vm376, %v396, %v398
      %v400 = vrot.slane %v254, 4
      %v401 = vsel %vm376, %v398, %v400
      %v402 = vrot.slane %v255, 4
      %v403 = vsel %vm376, %v400, %v402
      %v404 = vrot.slane %v256, 4
      %v405 = vsel %vm376, %v402, %v404
      %v406 = vrot.slane %v257, 4
      %v407 = vsel %vm376, %v404, %v406
      %v409 = vsel %vm376, %v406, 0.0
      %411 = vrot.lane.b32.xlu0 %v277, 16
      %v412 = vpop.permute.xlu0 %411
      %413 = vrot.lane.b32.xlu0 %v279, 16
      %v414 = vpop.permute.xlu0 %413
      %415 = vrot.lane.b32.xlu0 %v281, 16
      %v416 = vpop.permute.xlu0 %415
      %417 = vrot.lane.b32.xlu0 %v283, 16
      %v418 = vpop.permute.xlu0 %417
      %419 = vrot.lane.b32.xlu0 %v285, 16
      %v420 = vpop.permute.xlu0 %419
      %421 = vrot.lane.b32.xlu0 %v287, 16
      %v422 = vpop.permute.xlu0 %421
      %423 = vrot.lane.b32.xlu0 %v289, 16
      %v424 = vpop.permute.xlu0 %423
      %425 = vrot.lane.b32.xlu0 %v291, 16
      %v426 = vpop.permute.xlu0 %425
      %427 = vrot.lane.b32.xlu0 %v293, 16
      %v428 = vpop.permute.xlu0 %427
      %429 = vrot.lane.b32.xlu0 %v295, 16
      %v430 = vpop.permute.xlu0 %429
      %431 = vrot.lane.b32.xlu0 %v297, 16
      %v432 = vpop.permute.xlu0 %431
      %433 = vrot.lane.b32.xlu0 %v299, 16
      %v434 = vpop.permute.xlu0 %433
      %435 = vrot.lane.b32.xlu0 %v301, 16
      %v436 = vpop.permute.xlu0 %435
      %437 = vrot.lane.b32.xlu0 %v303, 16
      %v438 = vpop.permute.xlu0 %437
      %439 = vrot.lane.b32.xlu0 %v305, 16
      %v440 = vpop.permute.xlu0 %439
      %441 = vrot.lane.b32.xlu0 %v307, 16
      %v442 = vpop.permute.xlu0 %441
      %460 = vrot.lane.b32.xlu0 %v311, 32
      %v461 = vpop.permute.xlu0 %460
      %462 = vrot.lane.b32.xlu0 %v313, 32
      %v463 = vpop.permute.xlu0 %462
      %464 = vrot.lane.b32.xlu0 %v315, 32
      %v465 = vpop.permute.xlu0 %464
      %466 = vrot.lane.b32.xlu0 %v317, 32
      %v467 = vpop.permute.xlu0 %466
      %468 = vrot.lane.b32.xlu0 %v319, 32
      %v469 = vpop.permute.xlu0 %468
      %470 = vrot.lane.b32.xlu0 %v321, 32
      %v471 = vpop.permute.xlu0 %470
      %472 = vrot.lane.b32.xlu0 %v323, 32
      %v473 = vpop.permute.xlu0 %472
      %474 = vrot.lane.b32.xlu0 %v325, 32
      %v475 = vpop.permute.xlu0 %474
      %476 = vrot.lane.b32.xlu0 %v327, 32
      %v477 = vpop.permute.xlu0 %476
      %478 = vrot.lane.b32.xlu0 %v329, 32
      %v479 = vpop.permute.xlu0 %478
      %480 = vrot.lane.b32.xlu0 %v331, 32
      %v481 = vpop.permute.xlu0 %480
      %482 = vrot.lane.b32.xlu0 %v333, 32
      %v483 = vpop.permute.xlu0 %482
      %484 = vrot.lane.b32.xlu0 %v335, 32
      %v485 = vpop.permute.xlu0 %484
      %486 = vrot.lane.b32.xlu0 %v337, 32
      %v487 = vpop.permute.xlu0 %486
      %488 = vrot.lane.b32.xlu0 %v339, 32
      %v489 = vpop.permute.xlu0 %488
      %490 = vrot.lane.b32.xlu0 %v341, 32
      %v491 = vpop.permute.xlu0 %490
      %509 = vrot.lane.b32.xlu0 %v345, 48
      %v510 = vpop.permute.xlu0 %509
      %511 = vrot.lane.b32.xlu0 %v347, 48
      %v512 = vpop.permute.xlu0 %511
      %513 = vrot.lane.b32.xlu0 %v349, 48
      %v514 = vpop.permute.xlu0 %513
      %515 = vrot.lane.b32.xlu0 %v351, 48
      %v516 = vpop.permute.xlu0 %515
      %517 = vrot.lane.b32.xlu0 %v353, 48
      %v518 = vpop.permute.xlu0 %517
      %519 = vrot.lane.b32.xlu0 %v355, 48
      %v520 = vpop.permute.xlu0 %519
      %521 = vrot.lane.b32.xlu0 %v357, 48
      %v522 = vpop.permute.xlu0 %521
      %523 = vrot.lane.b32.xlu0 %v359, 48
      %v524 = vpop.permute.xlu0 %523
      %525 = vrot.lane.b32.xlu0 %v361, 48
      %v526 = vpop.permute.xlu0 %525
      %527 = vrot.lane.b32.xlu0 %v363, 48
      %v528 = vpop.permute.xlu0 %527
      %529 = vrot.lane.b32.xlu0 %v365, 48
      %v530 = vpop.permute.xlu0 %529
      %531 = vrot.lane.b32.xlu0 %v367, 48
      %v532 = vpop.permute.xlu0 %531
      %533 = vrot.lane.b32.xlu0 %v369, 48
      %v534 = vpop.permute.xlu0 %533
      %535 = vrot.lane.b32.xlu0 %v371, 48
      %v536 = vpop.permute.xlu0 %535
      %537 = vrot.lane.b32.xlu0 %v373, 48
      %v538 = vpop.permute.xlu0 %537
      %539 = vrot.lane.b32.xlu0 %v375, 48
      %v540 = vpop.permute.xlu0 %539
      %558 = vrot.lane.b32.xlu0 %v379, 64
      %v559 = vpop.permute.xlu0 %558
      %560 = vrot.lane.b32.xlu0 %v381, 64
      %v561 = vpop.permute.xlu0 %560
      %562 = vrot.lane.b32.xlu0 %v383, 64
      %v563 = vpop.permute.xlu0 %562
      %564 = vrot.lane.b32.xlu0 %v385, 64
      %v565 = vpop.permute.xlu0 %564
      %566 = vrot.lane.b32.xlu0 %v387, 64
      %v567 = vpop.permute.xlu0 %566
      %568 = vrot.lane.b32.xlu0 %v389, 64
      %v569 = vpop.permute.xlu0 %568
      %570 = vrot.lane.b32.xlu0 %v391, 64
      %v571 = vpop.permute.xlu0 %570
      %572 = vrot.lane.b32.xlu0 %v393, 64
      %v573 = vpop.permute.xlu0 %572
      %574 = vrot.lane.b32.xlu0 %v395, 64
      %v575 = vpop.permute.xlu0 %574
      %576 = vrot.lane.b32.xlu0 %v397, 64
      %v577 = vpop.permute.xlu0 %576
      %578 = vrot.lane.b32.xlu0 %v399, 64
      %v579 = vpop.permute.xlu0 %578
      %580 = vrot.lane.b32.xlu0 %v401, 64
      %v581 = vpop.permute.xlu0 %580
      %582 = vrot.lane.b32.xlu0 %v403, 64
      %v583 = vpop.permute.xlu0 %582
      %584 = vrot.lane.b32.xlu0 %v405, 64
      %v585 = vpop.permute.xlu0 %584
      %586 = vrot.lane.b32.xlu0 %v407, 64
      %v587 = vpop.permute.xlu0 %586
      %588 = vrot.lane.b32.xlu0 %v409, 64
      %v589 = vpop.permute.xlu0 %588
      %vm606 = vcmask 130048
      %v607 = vsel %vm606, %v242, %v412
      %v608 = vsel %vm606, %v243, %v414
      %v609 = vsel %vm606, %v244, %v416
      %v610 = vsel %vm606, %v245, %v418
      %v611 = vsel %vm606, %v246, %v420
      %v612 = vsel %vm606, %v247, %v422
      %v613 = vsel %vm606, %v248, %v424
      %v614 = vsel %vm606, %v249, %v426
      %v615 = vsel %vm606, %v250, %v428
      %v616 = vsel %vm606, %v251, %v430
      %v617 = vsel %vm606, %v252, %v432
      %v618 = vsel %vm606, %v253, %v434
      %v619 = vsel %vm606, %v254, %v436
      %v620 = vsel %vm606, %v255, %v438
      %v621 = vsel %vm606, %v256, %v440
      %v622 = vsel %vm606, %v257, %v442
      %vm623 = vcmask 261120
      %v624 = vsel %vm623, %v607, %v461
      %v625 = vsel %vm623, %v608, %v463
      %v626 = vsel %vm623, %v609, %v465
      %v627 = vsel %vm623, %v610, %v467
      %v628 = vsel %vm623, %v611, %v469
      %v629 = vsel %vm623, %v612, %v471
      %v630 = vsel %vm623, %v613, %v473
      %v631 = vsel %vm623, %v614, %v475
      %v632 = vsel %vm623, %v615, %v477
      %v633 = vsel %vm623, %v616, %v479
      %v634 = vsel %vm623, %v617, %v481
      %v635 = vsel %vm623, %v618, %v483
      %v636 = vsel %vm623, %v619, %v485
      %v637 = vsel %vm623, %v620, %v487
      %v638 = vsel %vm623, %v621, %v489
      %v639 = vsel %vm623, %v622, %v491
      %vm640 = vcmask 392192
      %v641 = vsel %vm640, %v624, %v510
      %v642 = vsel %vm640, %v625, %v512
      %v643 = vsel %vm640, %v626, %v514
      %v644 = vsel %vm640, %v627, %v516
      %v645 = vsel %vm640, %v628, %v518
      %v646 = vsel %vm640, %v629, %v520
      %v647 = vsel %vm640, %v630, %v522
      %v648 = vsel %vm640, %v631, %v524
      %v649 = vsel %vm640, %v632, %v526
      %v650 = vsel %vm640, %v633, %v528
      %v651 = vsel %vm640, %v634, %v530
      %v652 = vsel %vm640, %v635, %v532
      %v653 = vsel %vm640, %v636, %v534
      %v654 = vsel %vm640, %v637, %v536
      %v655 = vsel %vm640, %v638, %v538
      %v656 = vsel %vm640, %v639, %v540
      %vm657 = vcmask 523264
      %v658 = vsel %vm657, %v641, %v559
      %v659 = vsel %vm657, %v642, %v561
      %v660 = vsel %vm657, %v643, %v563
      %v661 = vsel %vm657, %v644, %v565
      %v662 = vsel %vm657, %v645, %v567
      %v663 = vsel %vm657, %v646, %v569
      %v664 = vsel %vm657, %v647, %v571
      %v665 = vsel %vm657, %v648, %v573
      %v666 = vsel %vm657, %v649, %v575
      %v667 = vsel %vm657, %v650, %v577
      %v668 = vsel %vm657, %v651, %v579
      %v669 = vsel %vm657, %v652, %v581
      %v670 = vsel %vm657, %v653, %v583
      %v671 = vsel %vm657, %v654, %v585
      %v672 = vsel %vm657, %v655, %v587
      %v673 = vsel %vm657, %v656, %v589
      %v674 = vpack.c.bf16 %v659, %v658
      %v675 = vpack.c.bf16 %v661, %v660
      %v676 = vpack.c.bf16 %v663, %v662
      %v677 = vpack.c.bf16 %v665, %v664
      %v678 = vpack.c.bf16 %v667, %v666
      %v679 = vpack.c.bf16 %v669, %v668
      %v680 = vpack.c.bf16 %v671, %v670
      %v681 = vpack.c.bf16 %v673, %v672
      %v682 = vld [vmem:[%s1] sm:$0xf]
      %v683 = vld [vmem:[%s1 + $0x4] sm:$0xf]
      %v684 = vld [vmem:[%s1 + $0x8] sm:$0xf]
      %v685 = vld [vmem:[%s1 + $0xc] sm:$0xf]
      %v686 = vld [vmem:[%s1 + $0x10] sm:$0xf]
      %v687 = vld [vmem:[%s1 + $0x14] sm:$0xf]
      %v688 = vld [vmem:[%s1 + $0x18] sm:$0xf]
      %v689 = vld [vmem:[%s1 + $0x1c] sm:$0xf]
      %v690 = vld [vmem:[%s1 + $0x20] sm:$0xf]
      %v691 = vld [vmem:[%s1 + $0x24] sm:$0xf]
      %v692 = vld [vmem:[%s2] sm:$0xff]
      %v693 = vld [vmem:[%s2 + $0x8] sm:$0xff]
      %v694 = vld [vmem:[%s2 + $0x10] sm:$0xff]
      %v695 = vld [vmem:[%s2 + $0x18] sm:$0xff]
      %v696 = vld [vmem:[%s2 + $0x20] sm:$0xff]
      %v697 = vld [vmem:[%s2 + $0x28] sm:$0xff]
      %v698 = vld [vmem:[%s2 + $0x30] sm:$0xff]
      %v699 = vld [vmem:[%s2 + $0x38] sm:$0xff]
      %v700 = vld [vmem:[%s2 + $0x40] sm:$0xff]
      %v701 = vld [vmem:[%s2 + $0x48] sm:$0xff]
      %v702 = vld [vmem:[%s2 + $0x50] sm:$0xff]
      %v703 = vld [vmem:[%s2 + $0x58] sm:$0xff]
      %v704 = vld [vmem:[%s2 + $0x60] sm:$0xff]
      %v705 = vld [vmem:[%s2 + $0x68] sm:$0xff]
      %v706 = vld [vmem:[%s2 + $0x70] sm:$0xff]
      %v707 = vld [vmem:[%s2 + $0x78] sm:$0xff]
      %v718 = vunpack.c.l.b16 %v682
      %v719 = vunpack.c.l.b16 %v683
      %v720 = vunpack.c.l.b16 %v684
      %v721 = vunpack.c.l.b16 %v685
      %v722 = vunpack.c.l.b16 %v686
      %v723 = vunpack.c.l.b16 %v687
      %v724 = vunpack.c.l.b16 %v688
      %v725 = vunpack.c.l.b16 %v689
      %v726 = vunpack.c.l.b16 %v690
      %v727 = vunpack.c.l.b16 %v691
      %v728 = vpack.c.b16 %v719, %v718
      %v729 = vpack.c.b16 %v721, %v720
      %v730 = vpack.c.b16 %v723, %v722
      %v731 = vpack.c.b16 %v725, %v724
      %v732 = vpack.c.b16 %v727, %v726
      %vm738 = vcmask 654336
      %v740 = vsel %vm738, %v674, 0
      %v743 = vsel %vm738, %v675, 0
      %v746 = vsel %vm738, %v676, 0
      %v749 = vsel %vm738, %v677, 0
      %v752 = vsel %vm738, %v678, 0
      %v755 = vsel %vm738, %v679, 0
      %v758 = vsel %vm738, %v680, 0
      %v761 = vsel %vm738, %v681, 0
      %763 = vmatprep.subr.bf16.mxu0 0
      %764 = vmatpush1.bf16.msra.mxu0 %v728
      %765 = vmatprep.subr.bf16.mxu0 0
      %766 = vmatpush1.bf16.msra.mxu0 %v729
      %767 = vmatprep.subr.bf16.mxu0 0
      %768 = vmatpush1.bf16.msra.mxu0 %v730
      %769 = vmatprep.subr.bf16.mxu0 0
      %770 = vmatpush1.bf16.msra.mxu0 %v731
      %771 = vmatprep.subr.bf16.mxu0 0
      %772 = vmatpush1.bf16.msra.mxu0 %v732
      %773 = vmatprep.subr.bf16.mxu0 0
      %774 = vmatpush1.bf16.msra.mxu0 0
      %775 = vmatprep.subr.bf16.mxu0 0
      %776 = vmatpush1.bf16.msra.mxu0 0
      %777 = vmatprep.subr.bf16.mxu0 0
      %778 = vmatpush1.bf16.msra.mxu0 0
      %779 = vmatprep.subr.bf16.mxu0 0
      %780 = vmatpush1.bf16.msra.mxu0 0
      %781 = vmatprep.subr.bf16.mxu0 0
      %782 = vmatpush1.bf16.msra.mxu0 0
      %783 = vmatprep.subr.bf16.mxu0 0
      %784 = vmatpush1.bf16.msra.mxu0 0
      %785 = vmatprep.subr.bf16.mxu0 0
      %786 = vmatpush1.bf16.msra.mxu0 0
      %787 = vmatprep.subr.bf16.mxu0 0
      %788 = vmatpush1.bf16.msra.mxu0 0
      %789 = vmatprep.subr.bf16.mxu0 0
      %790 = vmatpush1.bf16.msra.mxu0 0
      %791 = vmatprep.subr.bf16.mxu0 0
      %792 = vmatpush1.bf16.msra.mxu0 0
      %793 = vmatprep.subr.bf16.mxu0 0
      %794 = vmatpush1.bf16.msra.mxu0 0
      %795 = vmatprep.mubr.bf16.mxu0 0
      %796 = vmatmul.mubr.bf16.gmra.mrb[0].mxu0 %v740
      %v797 = vpop.f32.mrb[0].mxu0
      %v798 = vadd.f32 %v692, %v797
      %v799 = vpop.f32.mrb[0].mxu0
      %v800 = vpop.f32.mrb[0].mxu0
      %v801 = vadd.f32 %v693, %v800
      %v802 = vpop.f32.mrb[0].mxu0
      %803 = vmatprep.mubr.bf16.mxu0 0
      %804 = vmatmul.mubr.bf16.gmra.mrb[0].mxu0 %v743
      %v805 = vpop.f32.mrb[0].mxu0
      %v806 = vadd.f32 %v694, %v805
      %v807 = vpop.f32.mrb[0].mxu0
      %v808 = vpop.f32.mrb[0].mxu0
      %v809 = vadd.f32 %v695, %v808
      %v810 = vpop.f32.mrb[0].mxu0
      %811 = vmatprep.mubr.bf16.mxu0 0
      %812 = vmatmul.mubr.bf16.gmra.mrb[0].mxu0 %v746
      %v813 = vpop.f32.mrb[0].mxu0
      %v814 = vadd.f32 %v696, %v813
      %v815 = vpop.f32.mrb[0].mxu0
      %v816 = vpop.f32.mrb[0].mxu0
      %v817 = vadd.f32 %v697, %v816
      %v818 = vpop.f32.mrb[0].mxu0
      %819 = vmatprep.mubr.bf16.mxu0 0
      %820 = vmatmul.mubr.bf16.gmra.mrb[0].mxu0 %v749
      %v821 = vpop.f32.mrb[0].mxu0
      %v822 = vadd.f32 %v698, %v821
      %v823 = vpop.f32.mrb[0].mxu0
      %v824 = vpop.f32.mrb[0].mxu0
      %v825 = vadd.f32 %v699, %v824
      %v826 = vpop.f32.mrb[0].mxu0
      %827 = vmatprep.mubr.bf16.mxu0 0
      %828 = vmatmul.mubr.bf16.gmra.mrb[0].mxu0 %v752
      %v829 = vpop.f32.mrb[0].mxu0
      %v830 = vadd.f32 %v700, %v829
      %v831 = vpop.f32.mrb[0].mxu0
      %v832 = vpop.f32.mrb[0].mxu0
      %v833 = vadd.f32 %v701, %v832
      %v834 = vpop.f32.mrb[0].mxu0
      %835 = vmatprep.mubr.bf16.mxu0 0
      %836 = vmatmul.mubr.bf16.gmra.mrb[0].mxu0 %v755
      %v837 = vpop.f32.mrb[0].mxu0
      %v838 = vadd.f32 %v702, %v837
      %v839 = vpop.f32.mrb[0].mxu0
      %v840 = vpop.f32.mrb[0].mxu0
      %v841 = vadd.f32 %v703, %v840
      %v842 = vpop.f32.mrb[0].mxu0
      %843 = vmatprep.mubr.bf16.mxu0 0
      %844 = vmatmul.mubr.bf16.gmra.mrb[0].mxu0 %v758
      %v845 = vpop.f32.mrb[0].mxu0
      %v846 = vadd.f32 %v704, %v845
      %v847 = vpop.f32.mrb[0].mxu0
      %v848 = vpop.f32.mrb[0].mxu0
      %v849 = vadd.f32 %v705, %v848
      %v850 = vpop.f32.mrb[0].mxu0
      %851 = vmatprep.mubr.bf16.mxu0 0
      %852 = vmatmul.mubr.bf16.gmra.mrb[0].mxu0 %v761
      %v853 = vpop.f32.mrb[0].mxu0
      %v854 = vadd.f32 %v706, %v853
      %v855 = vpop.f32.mrb[0].mxu0
      %v856 = vpop.f32.mrb[0].mxu0
      %v857 = vadd.f32 %v707, %v856
      %v858 = vpop.f32.mrb[0].mxu0
      %859 = vdwg.mxu0
      %v860 = vmax.f32 %v798, %v801
      %v861 = vrot.slane %v860, 4
      %v862 = vmax.f32 %v860, %v861
      %v863 = vrot.slane %v862, 2
      %v864 = vmax.f32 %v862, %v863
      %v865 = vrot.slane %v864, 1
      %v866 = vmax.f32 %v864, %v865
      %v867 = vmax.f32 %v806, %v809
      %v868 = vrot.slane %v867, 4
      %v869 = vmax.f32 %v867, %v868
      %v870 = vrot.slane %v869, 2
      %v871 = vmax.f32 %v869, %v870
      %v872 = vrot.slane %v871, 1
      %v873 = vmax.f32 %v871, %v872
      %v874 = vmax.f32 %v814, %v817
      %v875 = vrot.slane %v874, 4
      %v876 = vmax.f32 %v874, %v875
      %v877 = vrot.slane %v876, 2
      %v878 = vmax.f32 %v876, %v877
      %v879 = vrot.slane %v878, 1
      %v880 = vmax.f32 %v878, %v879
      %v881 = vmax.f32 %v822, %v825
      %v882 = vrot.slane %v881, 4
      %v883 = vmax.f32 %v881, %v882
      %v884 = vrot.slane %v883, 2
      %v885 = vmax.f32 %v883, %v884
      %v886 = vrot.slane %v885, 1
      %v887 = vmax.f32 %v885, %v886
      %v888 = vmax.f32 %v830, %v833
      %v889 = vrot.slane %v888, 4
      %v890 = vmax.f32 %v888, %v889
      %v891 = vrot.slane %v890, 2
      %v892 = vmax.f32 %v890, %v891
      %v893 = vrot.slane %v892, 1
      %v894 = vmax.f32 %v892, %v893
      %v895 = vmax.f32 %v838, %v841
      %v896 = vrot.slane %v895, 4
      %v897 = vmax.f32 %v895, %v896
      %v898 = vrot.slane %v897, 2
      %v899 = vmax.f32 %v897, %v898
      %v900 = vrot.slane %v899, 1
      %v901 = vmax.f32 %v899, %v900
      %v902 = vmax.f32 %v846, %v849
      %v903 = vrot.slane %v902, 4
      %v904 = vmax.f32 %v902, %v903
      %v905 = vrot.slane %v904, 2
      %v906 = vmax.f32 %v904, %v905
      %v907 = vrot.slane %v906, 1
      %v908 = vmax.f32 %v906, %v907
      %v909 = vmax.f32 %v854, %v857
      %v910 = vrot.slane %v909, 4
      %v911 = vmax.f32 %v909, %v910
      %v912 = vrot.slane %v911, 2
      %v913 = vmax.f32 %v911, %v912
      %v914 = vrot.slane %v913, 1
      %v915 = vmax.f32 %v913, %v914
      %v916 = vmax.f32 %v866, 0.0
      %v917 = vmax.f32 %v873, 0.0
      %v918 = vmax.f32 %v880, 0.0
      %v919 = vmax.f32 %v887, 0.0
      %v920 = vmax.f32 %v894, 0.0
      %v921 = vmax.f32 %v901, 0.0
      %v922 = vmax.f32 %v908, 0.0
      %v923 = vmax.f32 %v915, 0.0
      %v924 = vld [vmem:[%s3] sm:$0xff]
      %v925 = vld [vmem:[%s3 + $0x8] sm:$0xff]
      %v926 = vld [vmem:[%s3 + $0x10] sm:$0xff]
      %v927 = vld [vmem:[%s3 + $0x18] sm:$0xff]
      %v928 = vld [vmem:[%s3 + $0x20] sm:$0xff]
      %v929 = vld [vmem:[%s3 + $0x28] sm:$0xff]
      %v930 = vld [vmem:[%s3 + $0x30] sm:$0xff]
      %v931 = vld [vmem:[%s3 + $0x38] sm:$0xff]
      %v932 = vld [vmem:[%s3 + $0x40] sm:$0xff]
      %v933 = vld [vmem:[%s3 + $0x48] sm:$0xff]
      %v934 = vld [vmem:[%s3 + $0x50] sm:$0xff]
      %v935 = vld [vmem:[%s3 + $0x58] sm:$0xff]
      %v936 = vld [vmem:[%s3 + $0x60] sm:$0xff]
      %v937 = vld [vmem:[%s3 + $0x68] sm:$0xff]
      %v938 = vld [vmem:[%s3 + $0x70] sm:$0xff]
      %v939 = vld [vmem:[%s3 + $0x78] sm:$0xff]
      %v940 = vld [vmem:[%s4] sm:$0x1]
      %v942 = vlaneseq
      %v943 = vshrl.u32 %v942, 7
      %v944 = vsub.s32 0, %v943
      %v945 = vrot.slane %v940, %v944
      %vm955 = vcmask 1041409
      %v956 = vsel %vm955, %v917, %v916
      %vm957 = vcmask 1042434
      %v958 = vsel %vm957, %v918, %v956
      %vm959 = vcmask 1043459
      %v960 = vsel %vm959, %v919, %v958
      %vm961 = vcmask 1044484
      %v962 = vsel %vm961, %v920, %v960
      %vm963 = vcmask 1045509
      %v964 = vsel %vm963, %v921, %v962
      %vm965 = vcmask 1046534
      %v966 = vsel %vm965, %v922, %v964
      %vm967 = vcmask 1047559
      %v968 = vsel %vm967, %v923, %v966
      %970 = vmatprep.subr.mxu0 0.0
      %971 = vmatpush1.msra.mxu0 %v924
      %972 = vmatprep.subr.mxu0 0.0
      %973 = vmatpush1.msra.mxu0 %v925
      %974 = vmatprep.subr.mxu0 0.0
      %975 = vmatpush1.msra.mxu0 %v926
      %976 = vmatprep.subr.mxu0 0.0
      %977 = vmatpush1.msra.mxu0 %v927
      %978 = vmatprep.subr.mxu0 0.0
      %979 = vmatpush1.msra.mxu0 %v928
      %980 = vmatprep.subr.mxu0 0.0
      %981 = vmatpush1.msra.mxu0 %v929
      %982 = vmatprep.subr.mxu0 0.0
      %983 = vmatpush1.msra.mxu0 %v930
      %984 = vmatprep.subr.mxu0 0.0
      %985 = vmatpush1.msra.mxu0 %v931
      %986 = vmatprep.subr.mxu0 0.0
      %987 = vmatpush1.msra.mxu0 %v932
      %988 = vmatprep.subr.mxu0 0.0
      %989 = vmatpush1.msra.mxu0 %v933
      %990 = vmatprep.subr.mxu0 0.0
      %991 = vmatpush1.msra.mxu0 %v934
      %992 = vmatprep.subr.mxu0 0.0
      %993 = vmatpush1.msra.mxu0 %v935
      %994 = vmatprep.subr.mxu0 0.0
      %995 = vmatpush1.msra.mxu0 %v936
      %996 = vmatprep.subr.mxu0 0.0
      %997 = vmatpush1.msra.mxu0 %v937
      %998 = vmatprep.subr.mxu0 0.0
      %999 = vmatpush1.msra.mxu0 %v938
      %1000 = vmatprep.subr.mxu0 0.0
      %1001 = vmatpush1.msra.mxu0 %v939
      %1002 = vmatprep.subr.mxu0 0.0
      %1003 = vmatpush1.msra.mxu0 0.0
      %1004 = vmatprep.subr.mxu0 0.0
      %1005 = vmatpush1.msra.mxu0 0.0
      %1006 = vmatprep.subr.mxu0 0.0
      %1007 = vmatpush1.msra.mxu0 0.0
      %1008 = vmatprep.subr.mxu0 0.0
      %1009 = vmatpush1.msra.mxu0 0.0
      %1010 = vmatprep.subr.mxu0 0.0
      %1011 = vmatpush1.msra.mxu0 0.0
      %1012 = vmatprep.subr.mxu0 0.0
      %1013 = vmatpush1.msra.mxu0 0.0
      %1014 = vmatprep.subr.mxu0 0.0
      %1015 = vmatpush1.msra.mxu0 0.0
      %1016 = vmatprep.subr.mxu0 0.0
      %1017 = vmatpush1.msra.mxu0 0.0
      %1018 = vmatprep.subr.mxu0 0.0
      %1019 = vmatpush1.msra.mxu0 0.0
      %1020 = vmatprep.subr.mxu0 0.0
      %1021 = vmatpush1.msra.mxu0 0.0
      %1022 = vmatprep.subr.mxu0 0.0
      %1023 = vmatpush1.msra.mxu0 0.0
      %1024 = vmatprep.subr.mxu0 0.0
      %1025 = vmatpush1.msra.mxu0 0.0
      %1026 = vmatprep.subr.mxu0 0.0
      %1027 = vmatpush1.msra.mxu0 0.0
      %1028 = vmatprep.subr.mxu0 0.0
      %1029 = vmatpush1.msra.mxu0 0.0
      %1030 = vmatprep.subr.mxu0 0.0
      %1031 = vmatpush1.msra.mxu0 0.0
      %1032 = vmatprep.subr.mxu0 0.0
      %1033 = vmatpush1.msra.mxu0 0.0
      %1034 = vmatprep.mubr.f32.mxu0 0.0
      %1035 = vmatmul.mubr.f32.gmra.mrb[0].mxu0 %v968
      %v1036 = vpop.f32.mrb[0].mxu0
      %v1037 = vadd.f32 %v945, %v1036
      %v1038 = vpop.f32.mrb[0].mxu0
      %1039 = vdwg.mxu0
      %1040 = vst [vmem:[%s224] sm:$0xff] %v1037
      %p1041 = scmp.lt.s32.totalorder %s16, 1
      %s1042 = scalar_select %p1041, %s16, 1
      %s1043 = smul.addr %s1042, 8
      %s1044 = scalar_lea.vmem %s5, %s1043
      // Predicated region
      $region41: #{conv_classifier_forward.1} parent=39 // pred_check
        %p1045 = pneg %p144
      $region42: #{conv_classifier_forward.1} parent=39 // pred_check_branch
        %1047 = sbr.rel (%p1045) target = $region44
      $region43: #{conv_classifier_forward.1} parent=39 // pred_region
        _
      $region44: #{conv_classifier_forward.1} parent=39 // pred_fallthru
        _
    $region40: #{conv_classifier_forward.1} parent=5 // pred_fallthru
      _
    %p1048 = scmp.le.s32.totalorder 2, %s11
    // Predicated region
    $region45: #{conv_classifier_forward.1} parent=5 // pred_check
      %p1049 = pneg %p1048
    $region46: #{conv_classifier_forward.1} parent=5 // pred_check_branch
      %1051 = sbr.rel (%p1049) target = $region48
    $region47: #{conv_classifier_forward.1} parent=5 // pred_region
      %s1052 = ssub.s32 %s11, 2
      // Predicated region
      $region49: #{conv_classifier_forward.1} parent=47 // pred_check
        %p1053 = pneg %p150
      $region50: #{conv_classifier_forward.1} parent=47 // pred_check_branch
        %1055 = sbr.rel (%p1053) target = $region52
      $region51: #{conv_classifier_forward.1} parent=47 // pred_region
        %p1056 = scmp.lt.s32.totalorder %s17, 1
        %s1057 = scalar_select %p1056, %s17, 1
        %s1058 = smul.addr %s1057, 8
        %s1059 = scalar_lea.vmem %s5, %s1058
      $region52: #{conv_classifier_forward.1} parent=47 // pred_fallthru
        _
    $region48: #{conv_classifier_forward.1} parent=5 // pred_fallthru
      _
  $region6: #{conv_classifier_forward.1} parent=0 // loop_footer
    %s15 = sadd.s32 1, %s11
  $region7: #{conv_classifier_forward.1} parent=0 // loop_footer_branch
    %10 = sbr.rel target = $region3
  $region8: #{conv_classifier_forward.1} parent=0 // loop_exit
    _

</llo_original>
